<compile_context>
chip_gen: v7x
topology: tpu7x:2x2x1
jax: 0.10.0
libtpu: 0.0.40
codegen_flags: <defaults>
</compile_context>

<pallas_src>
import jax
import jax.numpy as jnp
from jax.experimental import pallas as pl
from jax.experimental.pallas import tpu as pltpu

_LANE = 128
_SUBLANE = 8


def _round_up(x, m):
    return ((x + m - 1) // m) * m


def _linear_kernel(x_ref, w_ref, b_ref, o_ref):
    # x_ref: (tm, D), w_ref: (D, Cpad), b_ref: (1, Cpad), o_ref: (tm, Cpad)
    acc = jnp.dot(x_ref[...], w_ref[...], preferred_element_type=jnp.float32)
    # Keep the bias add in f32 on the VPU (v5e has no bf16 VPU path); only the
    # final store casts to the output dtype.
    o_ref[...] = (acc + b_ref[...]).astype(o_ref.dtype)


def prepare_classifier_params(weight, bias):
    """One-time parameter prep, hoisted out of the per-call hot path.

    weight: [cls_dim, D] (PyTorch nn.Linear layout), bias: [cls_dim].
    Returns (W as [D, Cpad], bias as [1, Cpad]) with Cpad a multiple of 128,
    zero-padded, so the kernel output is lane-dense and no per-call transpose
    is emitted.
    """
    cls_dim, D = weight.shape
    c_pad = _round_up(cls_dim, _LANE)
    w = jnp.zeros((D, c_pad), weight.dtype).at[:, :cls_dim].set(weight.T)
    b = jnp.zeros((1, c_pad), bias.dtype).at[:, :cls_dim].set(bias)
    return w, b


def classifier_forward(x, w_prepped, b_prepped, cls_dim, *, tm_max=512):
    """x: [B, L, K, D]; w_prepped: [D, Cpad]; b_prepped: [1, Cpad]."""
    B, L, K, D = x.shape
    c_pad = w_prepped.shape[1]
    rows = B * L * K

    # Row tile: whole problem in one grid step when it is small, otherwise up
    # to tm_max rows per step (multiple of 8 sublanes). Pad the row count so
    # the grid divides evenly instead of asserting divisibility.
    tm = min(_round_up(rows, _SUBLANE), tm_max)
    rows_pad = _round_up(rows, tm)

    x2 = x.reshape(rows, D)
    if rows_pad != rows:
        x2 = jnp.pad(x2, ((0, rows_pad - rows), (0, 0)))

    bytes_per_el = jnp.dtype(x.dtype).itemsize
    cost = pl.CostEstimate(
        flops=2 * rows_pad * D * c_pad,
        transcendentals=0,
        bytes_accessed=bytes_per_el * (rows_pad * D + D * c_pad + c_pad
                                       + rows_pad * c_pad),
    )

    # TODO(synk): for very large D * c_pad heads on v7x (64 MiB VMEM), add a
    # second grid axis over c_pad with a (D, tn) weight tile to keep the
    # resident weight + double buffers within the scoped VMEM budget.
    out2 = pl.pallas_call(
        _linear_kernel,
        out_shape=jax.ShapeDtypeStruct((rows_pad, c_pad), x.dtype),
        grid_spec=pltpu.PrefetchScalarGridSpec(
            num_scalar_prefetch=0,
            grid=(rows_pad // tm,),
            in_specs=[
                pl.BlockSpec((tm, D), lambda i: (i, 0)),      # row tile
                pl.BlockSpec((D, c_pad), lambda i: (0, 0)),   # resident weight
                pl.BlockSpec((1, c_pad), lambda i: (0, 0)),   # resident bias
            ],
            out_specs=pl.BlockSpec((tm, c_pad), lambda i: (i, 0)),
        ),
        compiler_params=pltpu.CompilerParams(
            dimension_semantics=("parallel",)),
        cost_estimate=cost,
    )(x2, w_prepped, b_prepped)

    return out2[:rows, :cls_dim].reshape(B, L, K, cls_dim)


if __name__ == "__main__":
    # Classifier(dim=D, type_num=..., cls_dim=C): only a Linear(D, C) is used.
    B, L, K, D, C = 2, 8, 4, 32, 16

    key = jax.random.PRNGKey(0)
    kx, kw, kb = jax.random.split(key, 3)

    x = jax.random.normal(kx, (B, L, K, D), dtype=jnp.float32)
    # Deterministic "nn.Linear"-style params (synthetic, not a checkpoint).
    bound = 1.0 / (D ** 0.5)
    weight = jax.random.uniform(kw, (C, D), minval=-bound, maxval=bound,
                                dtype=jnp.float32)
    bias = jax.random.uniform(kb, (C,), minval=-bound, maxval=bound,
                              dtype=jnp.float32)

    # Parameter prep happens once, outside the per-call hot path.
    w_prepped, b_prepped = prepare_classifier_params(weight, bias)
    w_prepped, b_prepped = jax.block_until_ready((w_prepped, b_prepped))

    out = classifier_forward(x, w_prepped, b_prepped, C)
    jax.block_until_ready(out)

    # Sanity check against plain JAX reference.
    ref = x @ weight.T + bias
    assert out.shape == (B, L, K, C)
    assert jnp.allclose(out, ref, atol=1e-5, rtol=1e-5)
    print("KERNEL_OK")
</pallas_src>

<mosaic_0001>
module attributes {stable_mosaic.version = 11 : i64} {
  func.func @_linear_kernel(%arg0: i32, %arg1: memref<64x32xf32, #tpu.memory_space<vmem>>, %arg2: memref<32x128xf32, #tpu.memory_space<vmem>>, %arg3: memref<1x128xf32, #tpu.memory_space<vmem>>, %arg4: memref<64x128xf32, #tpu.memory_space<vmem>>) attributes {dimension_semantics = [#tpu.dimension_semantics<parallel>], iteration_bounds = array<i64: 1>, scalar_prefetch = 0 : i64, scratch_operands = 0 : i64, tpu.core_type = #tpu.core_type<tc>, window_params = [{transform_indices = @transform_0, window_bounds = array<i64: 64, 32>}, {pipeline_mode = #tpu.pipeline_mode<synchronous>, transform_indices = @transform_1, window_bounds = array<i64: 32, 128>}, {pipeline_mode = #tpu.pipeline_mode<synchronous>, transform_indices = @transform_2, window_bounds = array<i64: 1, 128>}, {transform_indices = @transform_3, window_bounds = array<i64: 64, 128>}]} {
    %c0 = arith.constant 0 : index
    %c0_0 = arith.constant 0 : index
    %0 = vector.load %arg1[%c0, %c0_0] : memref<64x32xf32, #tpu.memory_space<vmem>>, vector<64x32xf32>
    %c0_1 = arith.constant 0 : index
    %c0_2 = arith.constant 0 : index
    %1 = vector.load %arg2[%c0_1, %c0_2] : memref<32x128xf32, #tpu.memory_space<vmem>>, vector<32x128xf32>
    %cst = arith.constant dense<0.000000e+00> : vector<64x128xf32>
    %2 = tpu.matmul %0, %1, %cst {dimension_numbers = #tpu.dot_dimension_numbers<[1], [0], [0], [1], [0, 0, 1, 1], [], []>} : vector<64x32xf32>, vector<32x128xf32>, vector<64x128xf32> -> vector<64x128xf32>
    %c0_3 = arith.constant 0 : index
    %c0_4 = arith.constant 0 : index
    %3 = vector.load %arg3[%c0_3, %c0_4] : memref<1x128xf32, #tpu.memory_space<vmem>>, vector<1x128xf32>
    %4 = vector.broadcast %3 : vector<1x128xf32> to vector<64x128xf32>
    %5 = arith.addf %2, %4 : vector<64x128xf32>
    %c0_5 = arith.constant 0 : index
    %c0_6 = arith.constant 0 : index
    %6 = vector.load %arg4[%c0_5, %c0_6] : memref<64x128xf32, #tpu.memory_space<vmem>>, vector<64x128xf32>
    tpu.vector_store %arg4[%c0_5, %c0_6], %5 {strides = array<i32>} : memref<64x128xf32, #tpu.memory_space<vmem>>, vector<64x128xf32>,
    return
  }
  func.func @transform_0(%arg0: i32) -> (i32, i32) {
    %c0_i32 = arith.constant 0 : i32
    %c0_i32_0 = arith.constant 0 : i32
    return %arg0, %c0_i32 : i32, i32
  }
  func.func @transform_1(%arg0: i32) -> (i32, i32) {
    %c0_i32 = arith.constant 0 : i32
    %c0_i32_0 = arith.constant 0 : i32
    %c0_i32_1 = arith.constant 0 : i32
    return %c0_i32, %c0_i32_0 : i32, i32
  }
  func.func @transform_2(%arg0: i32) -> (i32, i32) {
    %c0_i32 = arith.constant 0 : i32
    %c0_i32_0 = arith.constant 0 : i32
    %c0_i32_1 = arith.constant 0 : i32
    return %c0_i32, %c0_i32_0 : i32, i32
  }
  func.func @transform_3(%arg0: i32) -> (i32, i32) {
    %c0_i32 = arith.constant 0 : i32
    %c0_i32_0 = arith.constant 0 : i32
    return %arg0, %c0_i32 : i32, i32
  }
}

</mosaic_0001>

<llo_original>
// kernel: tpu_custom_call.1
$region0: #{tpu_custom_call.1}
  #allocation0 [shape = 'u32[]', space=smem, size = 0x4, offset = 0x4, fixed_abs, tag = 'smem constant byte address 0x4 - core index']
  #allocation1 [shape = 'u32[144,128]{1,0:T(1,128)}', space=vmem, size = 0x12000, scoped, tag = 'internal scratch']
  %s0 = inlined_call_operand.vmem [shape: f32[64,32], index: 0, kind: input, shape index: {}]
  %s1 = inlined_call_operand.vmem [shape: f32[32,128], index: 1, kind: input, shape index: {}]
  %s2 = inlined_call_operand.vmem [shape: f32[1,128], index: 2, kind: input, shape index: {}]
  %s3 = inlined_call_operand.hbm [shape: f32[64,128], index: 3, kind: output, shape index: {}]
  %s4 = sld [smem:[#allocation0]]
  $region22: #{tpu_custom_call.1} parent=0
    _
  %s6 = ssub.s32 1, %s4
  %s7 = scalar_select 0, %s6, %s4
  $region1: #{tpu_custom_call.1} parent=0
    #allocation2 [shape = 'u8[32768]{0}', space=vmem, size = 0x8000, scoped, tag = 'output window, operand 0, single buffered']
    #allocation3 [shape = 's32[1]{0}', space=sflag, size = 0x4, scoped, tag = 'scoped memory for tpu_custom_call.1']
    %8 = vsyncpa [#allocation3], 0
    // Predicated region
    $region2: #{tpu_custom_call.1} parent=1 // pred_check
      _
    $region3: #{tpu_custom_call.1} parent=1 // pred_check_branch
      %10 = sbr.rel (0) target = $region5
    $region4: #{tpu_custom_call.1} parent=1 // pred_region
      _
    $region5: #{tpu_custom_call.1} parent=1 // pred_fallthru
      _
    // Predicated region
    $region6: #{tpu_custom_call.1} parent=1 // pred_check
      _
    $region7: #{tpu_custom_call.1} parent=1 // pred_check_branch
      %12 = sbr.rel (0) target = $region9
    $region8: #{tpu_custom_call.1} parent=1 // pred_region
      _
    $region9: #{tpu_custom_call.1} parent=1 // pred_fallthru
      _
    // Predicated region
    $region10: #{tpu_custom_call.1} parent=1 // pred_check
      _
    $region11: #{tpu_custom_call.1} parent=1 // pred_check_branch
      %14 = sbr.rel (0) target = $region13
    $region12: #{tpu_custom_call.1} parent=1 // pred_region
      _
    $region13: #{tpu_custom_call.1} parent=1 // pred_fallthru
      _
    %v15 = vld [vmem:[%s0] sm:$0xff]
    %v16 = vld [vmem:[%s0 + $0x8] sm:$0xff]
    %v17 = vld [vmem:[%s0 + $0x10] sm:$0xff]
    %v18 = vld [vmem:[%s0 + $0x18] sm:$0xff]
    %v19 = vld [vmem:[%s0 + $0x20] sm:$0xff]
    %v20 = vld [vmem:[%s0 + $0x28] sm:$0xff]
    %v21 = vld [vmem:[%s0 + $0x30] sm:$0xff]
    %v22 = vld [vmem:[%s0 + $0x38] sm:$0xff]
    %v23 = vld [vmem:[%s1] sm:$0xff]
    %v24 = vld [vmem:[%s1 + $0x8] sm:$0xff]
    %v25 = vld [vmem:[%s1 + $0x10] sm:$0xff]
    %v26 = vld [vmem:[%s1 + $0x18] sm:$0xff]
    %v27 = vld [vmem:[%s2] sm:$0x1]
    %v29 = vlaneseq
    %v30 = vshrl.u32 %v29, 7
    %v31 = vsub.s32 0, %v30
    %v32 = vrot.slane %v27, %v31
    %vm34 = vcmask 261120
    %v36 = vsel %vm34, %v15, 0
    %v39 = vsel %vm34, %v16, 0
    %v42 = vsel %vm34, %v17, 0
    %v45 = vsel %vm34, %v18, 0
    %v48 = vsel %vm34, %v19, 0
    %v51 = vsel %vm34, %v20, 0
    %v54 = vsel %vm34, %v21, 0
    %v57 = vsel %vm34, %v22, 0
    %59 = vmatprep.subr.mxu0 0.0
    %60 = vmatpush1.msra.mxu0 %v23
    %61 = vmatprep.subr.mxu0 0.0
    %62 = vmatpush1.msra.mxu0 %v24
    %63 = vmatprep.subr.mxu0 0.0
    %64 = vmatpush1.msra.mxu0 %v25
    %65 = vmatprep.subr.mxu0 0.0
    %66 = vmatpush1.msra.mxu0 %v26
    %67 = vmatprep.subr.mxu0 0.0
    %68 = vmatpush1.msra.mxu0 0.0
    %69 = vmatprep.subr.mxu0 0.0
    %70 = vmatpush1.msra.mxu0 0.0
    %71 = vmatprep.subr.mxu0 0.0
    %72 = vmatpush1.msra.mxu0 0.0
    %73 = vmatprep.subr.mxu0 0.0
    %74 = vmatpush1.msra.mxu0 0.0
    %75 = vmatprep.subr.mxu0 0.0
    %76 = vmatpush1.msra.mxu0 0.0
    %77 = vmatprep.subr.mxu0 0.0
    %78 = vmatpush1.msra.mxu0 0.0
    %79 = vmatprep.subr.mxu0 0.0
    %80 = vmatpush1.msra.mxu0 0.0
    %81 = vmatprep.subr.mxu0 0.0
    %82 = vmatpush1.msra.mxu0 0.0
    %83 = vmatprep.subr.mxu0 0.0
    %84 = vmatpush1.msra.mxu0 0.0
    %85 = vmatprep.subr.mxu0 0.0
    %86 = vmatpush1.msra.mxu0 0.0
    %87 = vmatprep.subr.mxu0 0.0
    %88 = vmatpush1.msra.mxu0 0.0
    %89 = vmatprep.subr.mxu0 0.0
    %90 = vmatpush1.msra.mxu0 0.0
    %91 = vmatprep.subr.mxu0 0.0
    %92 = vmatpush1.msra.mxu0 0.0
    %93 = vmatprep.subr.mxu0 0.0
    %94 = vmatpush1.msra.mxu0 0.0
    %95 = vmatprep.subr.mxu0 0.0
    %96 = vmatpush1.msra.mxu0 0.0
    %97 = vmatprep.subr.mxu0 0.0
    %98 = vmatpush1.msra.mxu0 0.0
    %99 = vmatprep.subr.mxu0 0.0
    %100 = vmatpush1.msra.mxu0 0.0
    %101 = vmatprep.subr.mxu0 0.0
    %102 = vmatpush1.msra.mxu0 0.0
    %103 = vmatprep.subr.mxu0 0.0
    %104 = vmatpush1.msra.mxu0 0.0
    %105 = vmatprep.subr.mxu0 0.0
    %106 = vmatpush1.msra.mxu0 0.0
    %107 = vmatprep.subr.mxu0 0.0
    %108 = vmatpush1.msra.mxu0 0.0
    %109 = vmatprep.subr.mxu0 0.0
    %110 = vmatpush1.msra.mxu0 0.0
    %111 = vmatprep.subr.mxu0 0.0
    %112 = vmatpush1.msra.mxu0 0.0
    %113 = vmatprep.subr.mxu0 0.0
    %114 = vmatpush1.msra.mxu0 0.0
    %115 = vmatprep.subr.mxu0 0.0
    %116 = vmatpush1.msra.mxu0 0.0
    %117 = vmatprep.subr.mxu0 0.0
    %118 = vmatpush1.msra.mxu0 0.0
    %119 = vmatprep.subr.mxu0 0.0
    %120 = vmatpush1.msra.mxu0 0.0
    %121 = vmatprep.subr.mxu0 0.0
    %122 = vmatpush1.msra.mxu0 0.0
    %123 = vmatprep.mubr.f32.mxu0 0.0
    %124 = vmatmul.mubr.f32.gmra.mrb[0].mxu0 %v36
    %v125 = vpop.f32.mrb[0].mxu0
    %v126 = vadd.f32 %v32, %v125
    %v127 = vpop.f32.mrb[0].mxu0
    %128 = vmatprep.mubr.f32.mxu0 0.0
    %129 = vmatmul.mubr.f32.gmra.mrb[0].mxu0 %v39
    %v130 = vpop.f32.mrb[0].mxu0
    %v131 = vadd.f32 %v32, %v130
    %v132 = vpop.f32.mrb[0].mxu0
    %133 = vmatprep.mubr.f32.mxu0 0.0
    %134 = vmatmul.mubr.f32.gmra.mrb[0].mxu0 %v42
    %v135 = vpop.f32.mrb[0].mxu0
    %v136 = vadd.f32 %v32, %v135
    %v137 = vpop.f32.mrb[0].mxu0
    %138 = vmatprep.mubr.f32.mxu0 0.0
    %139 = vmatmul.mubr.f32.gmra.mrb[0].mxu0 %v45
    %v140 = vpop.f32.mrb[0].mxu0
    %v141 = vadd.f32 %v32, %v140
    %v142 = vpop.f32.mrb[0].mxu0
    %143 = vmatprep.mubr.f32.mxu0 0.0
    %144 = vmatmul.mubr.f32.gmra.mrb[0].mxu0 %v48
    %v145 = vpop.f32.mrb[0].mxu0
    %v146 = vadd.f32 %v32, %v145
    %v147 = vpop.f32.mrb[0].mxu0
    %148 = vmatprep.mubr.f32.mxu0 0.0
    %149 = vmatmul.mubr.f32.gmra.mrb[0].mxu0 %v51
    %v150 = vpop.f32.mrb[0].mxu0
    %v151 = vadd.f32 %v32, %v150
    %v152 = vpop.f32.mrb[0].mxu0
    %153 = vmatprep.mubr.f32.mxu0 0.0
    %154 = vmatmul.mubr.f32.gmra.mrb[0].mxu0 %v54
    %v155 = vpop.f32.mrb[0].mxu0
    %v156 = vadd.f32 %v32, %v155
    %v157 = vpop.f32.mrb[0].mxu0
    %158 = vmatprep.mubr.f32.mxu0 0.0
    %159 = vmatmul.mubr.f32.gmra.mrb[0].mxu0 %v57
    %v160 = vpop.f32.mrb[0].mxu0
    %v161 = vadd.f32 %v32, %v160
    %v162 = vpop.f32.mrb[0].mxu0
    %163 = vdwg.mxu0
    %164 = vst [vmem:[#allocation2] sm:$0xff] %v126
    %165 = vst [vmem:[#allocation2 + $0x8] sm:$0xff] %v131
    %166 = vst [vmem:[#allocation2 + $0x10] sm:$0xff] %v136
    %167 = vst [vmem:[#allocation2 + $0x18] sm:$0xff] %v141
    %168 = vst [vmem:[#allocation2 + $0x20] sm:$0xff] %v146
    %169 = vst [vmem:[#allocation2 + $0x28] sm:$0xff] %v151
    %170 = vst [vmem:[#allocation2 + $0x30] sm:$0xff] %v156
    %171 = vst [vmem:[#allocation2 + $0x38] sm:$0xff] %v161
    // Predicated region
    $region14: #{tpu_custom_call.1} parent=1 // pred_check
      _
    $region15: #{tpu_custom_call.1} parent=1 // pred_check_branch
      %173 = sbr.rel (0) target = $region17
    $region16: #{tpu_custom_call.1} parent=1 // pred_region
      %s175 = ssub.s32 1024, 1024
      %176 = vsyncadd [#allocation3], %s175
      %s177 = sshll.u32 [#allocation2], 4
      %s178 = int_to_ptr.vmem [resolvable:$true] %s177
      %183 = dma.vmem_to_hbm [thread:$0]  %s178, 1024, %s3, [#allocation3], 128, 128, 8
    $region17: #{tpu_custom_call.1} parent=1 // pred_fallthru
      _
    // Predicated region
    $region18: #{tpu_custom_call.1} parent=1 // pred_check
      _
    $region19: #{tpu_custom_call.1} parent=1 // pred_check_branch
      %185 = sbr.rel (0) target = $region21
    $region20: #{tpu_custom_call.1} parent=1 // pred_region
      %186 = dma.done [#allocation3], 1024
    $region21: #{tpu_custom_call.1} parent=1 // pred_fallthru
      _
    %187 = vsyncpa [#allocation3], 1

</llo_original>
